<compile_context>
chip_gen: v7x
topology: tpu7x:2x2x1
jax: 0.10.0
libtpu: 0.0.40
codegen_flags: <defaults>
</compile_context>

<pallas_src>
import functools

import jax
import jax.numpy as jnp
from jax.experimental import pallas as pl
from jax.experimental.pallas import tpu as pltpu


def weight_norm_effective(v, g):
    """Effective conv weight of torch.nn.utils.weight_norm: g * v / ||v||_(per out-channel)."""
    norm = jnp.sqrt(jnp.sum(v * v, axis=(1, 2), keepdims=True))
    return g.reshape(-1, 1, 1) * v / norm


def temporal_block_kernel(*refs, K, dilation, L, B, compute_dtype, fuse_ds):
    """Fused TemporalBlock forward for a tile of B sequences (one grid step).

    Layout: channels on sublanes, time (with the B sequences folded
    side-by-side) on lanes.  Each conv is ONE MXU contraction:
        (rows, K*C) @ (K*C, B*L)
    With fuse_ds the conv1 weight is row-stacked with the 1x1 downsample, so
    the first matmul yields [conv1 ; residual] in one pass.
    """
    if fuse_ds:
        x_ref, w1_ref, b1_ref, w2_ref, b2_ref, bd_ref, o_ref = refs
    else:
        x_ref, w1_ref, b1_ref, w2_ref, b2_ref, o_ref = refs

    d = dilation
    P = (K - 1) * d
    Cout = b1_ref.shape[0]
    cdt = compute_dtype

    def causal_im2col(seqs):
        # seqs: B arrays (C, L) already in compute dtype -> (K*C, B*L) operand.
        # TODO(synk): when L % 128 != 0 the b*L fold offsets are not lane
        # aligned; padding L to a multiple of 128 would make these concats free.
        cols = []
        for h in seqs:
            C = h.shape[0]
            hp = h if P == 0 else jnp.concatenate(
                [jnp.zeros((C, P), cdt), h], axis=1)                    # (C, L+P)
            cols.append(jnp.concatenate(
                [hp[:, j * d: j * d + L] for j in range(K)], axis=0))   # (K*C, L)
        return cols[0] if len(cols) == 1 else jnp.concatenate(cols, axis=1)

    # Cast once, BEFORE building the im2col copies (halves copy traffic in bf16).
    x_b = [x_ref[b].astype(cdt) for b in range(B)]                      # B x (Cin, L)

    # ---- conv1 (dilated, causal) [+ fused 1x1 downsample] -------------------
    y1 = jnp.dot(w1_ref[...], causal_im2col(x_b),
                 preferred_element_type=jnp.float32)                    # (rows, B*L)
    if fuse_ds:
        a1 = y1[:Cout]
        res = y1[Cout:] + bd_ref[...]                                   # residual rows
    else:
        a1 = y1
        res = (x_b[0] if B == 1 else
               jnp.concatenate(x_b, axis=1)).astype(jnp.float32)        # res = x
    h1 = jnp.maximum(a1 + b1_ref[...], 0.0)                             # relu1 (dropout=id)

    # ---- conv2 (dilated, causal) + bias + ReLU -------------------------------
    h1_b = [h1[:, b * L:(b + 1) * L].astype(cdt) for b in range(B)]
    a2 = jnp.dot(w2_ref[...], causal_im2col(h1_b),
                 preferred_element_type=jnp.float32)                    # (Cout, B*L)
    h2 = jnp.maximum(a2 + b2_ref[...], 0.0)                             # relu2 (dropout=id)

    # ---- residual add + final ReLU; single lane-dense store ------------------
    o_ref[0] = jnp.maximum(h2 + res, 0.0).astype(o_ref.dtype)


def _vmem_budget_and_limit():
    """Generation-aware VMEM budget (for tiling) and explicit compiler limit."""
    try:
        cap = int(pltpu.get_tpu_info().vmem_capacity_bytes)
    except Exception:                       # API drift / unknown chip: assume v7x per-TC
        cap = 64 * 2**20
    limit = min((cap * 3) // 4, 112 * 2**20)
    budget = max(limit - (4 << 20), limit // 2)   # headroom: weights + compiler scratch
    return budget, limit


def _choose_batch_tile(N, Cin, Cout, L, K, act_itemsize, compute_itemsize,
                       vmem_budget_bytes):
    """Pick the batch fold B: bounded by VMEM (incl. f32 intermediates), capped
    at 8, prefer N//B even (v7x megacore balance) and >= 2 grid steps."""
    if L >= 512:
        return 1                            # lanes already dense; skip B-folding
    per_seq = L * (
        2 * (Cin + Cout) * act_itemsize                         # dbl-buffered in/out blocks
        + (K * Cin + K * Cout + Cin + Cout) * compute_itemsize  # im2col + cast copies
        + 4 * (7 * Cout + Cin))                                 # f32 y1/h1/a2/h2/res/out
    cap = max(1, min(8, int(vmem_budget_bytes // max(per_seq, 1))))
    candidates = [b for b in range(1, min(cap, N) + 1) if N % b == 0]
    for pred in (lambda b: (N // b) % 2 == 0 and N // b >= 2,
                 lambda b: N // b >= 2,
                 lambda b: True):
        ok = [b for b in candidates if pred(b)]
        if ok:
            return max(ok)
    return 1


def temporal_block_forward(x, w1, b1, w2, b2, wd, bd, *, kernel_size, dilation,
                           batch_tile=None, compute_dtype=jnp.bfloat16):
    """x: (N, Cin, L) in PyTorch NCW layout (f32 or bf16 — bf16 activations halve
    HBM traffic for this mem-bound kernel).  Weights in PyTorch layout:
       w1: (Cout, Cin, K), w2: (Cout, Cout, K), wd: (Cout, Cin, 1) or None.
    Returns (N, Cout, L) in x.dtype.  MXU operands use compute_dtype with f32
    accumulation; use compute_dtype=jnp.float32 for bit-tight (1e-5) matching."""
    N, Cin, L = x.shape
    Cout = w1.shape[0]
    K = kernel_size
    fuse_ds = wd is not None
    if not fuse_ds:
        assert Cin == Cout, "downsample may only be omitted when n_inputs == n_outputs"
    cdt = compute_dtype

    # --- one-time weight prep: fold the K taps into the contraction axis -----
    # Column j*Cin + c of w1_f multiplies tap j / channel c of the im2col rows.
    w1_f = jnp.transpose(w1, (0, 2, 1)).reshape(Cout, K * Cin)
    if fuse_ds:
        # Fuse the 1x1 downsample: tap K-1 of the causal im2col is the
        # un-shifted x, so row-stacking wd into those columns makes a single
        # matmul produce [conv1 ; residual] (2*Cout rows).
        wd_rows = jnp.zeros((Cout, K * Cin), w1_f.dtype)
        wd_rows = wd_rows.at[:, (K - 1) * Cin:].set(wd[:, :, 0])
        w1_f = jnp.concatenate([w1_f, wd_rows], axis=0)                 # (2*Cout, K*Cin)
        bd_f = bd.reshape(Cout, 1).astype(jnp.float32)
    w1_f = w1_f.astype(cdt)
    w2_f = jnp.transpose(w2, (0, 2, 1)).reshape(Cout, K * Cout).astype(cdt)
    b1_f = b1.reshape(Cout, 1).astype(jnp.float32)
    b2_f = b2.reshape(Cout, 1).astype(jnp.float32)

    budget, vmem_limit = _vmem_budget_and_limit()
    act_is = jnp.dtype(x.dtype).itemsize
    cds = jnp.dtype(cdt).itemsize
    B = batch_tile if batch_tile is not None else _choose_batch_tile(
        N, Cin, Cout, L, K, act_is, cds, budget)
    assert N % B == 0, "batch_tile must divide N"
    # TODO(synk): for very long L / wide channels on v7x (64 MiB/TC), add an
    # L-tile grid axis with a causal left halo of 2*(K-1)*dilation (whole-L
    # blocks are kept here since the chooser + vmem_limit keep blocks legal).

    kernel = functools.partial(temporal_block_kernel, K=K, dilation=dilation,
                               L=L, B=B, compute_dtype=cdt, fuse_ds=fuse_ds)

    r1 = 2 * Cout if fuse_ds else Cout
    cost = pl.CostEstimate(
        flops=int(2 * N * L * (r1 * K * Cin + Cout * K * Cout)),
        transcendentals=0,
        bytes_accessed=int(N * L * (Cin + Cout) * act_is
                           + (w1_f.size + w2_f.size) * cds + 3 * Cout * 4),
    )

    # Weight/bias index maps are constant across the grid so they are fetched
    # once; they are tiny, so single-buffering them (pl.Buffered(1)) would save
    # negligible VMEM and is skipped.
    const = lambda i: (0, 0)
    in_specs = [
        pl.BlockSpec((B, Cin, L), lambda i: (i, 0, 0)),
        pl.BlockSpec((r1, K * Cin), const),
        pl.BlockSpec((Cout, 1), const),
        pl.BlockSpec((Cout, K * Cout), const),
        pl.BlockSpec((Cout, 1), const),
    ]
    args = [x, w1_f, b1_f, w2_f, b2_f]
    if fuse_ds:
        in_specs.append(pl.BlockSpec((Cout, 1), const))
        args.append(bd_f)

    folded = pl.pallas_call(
        kernel,
        out_shape=jax.ShapeDtypeStruct((N // B, Cout, B * L), x.dtype),
        grid_spec=pltpu.PrefetchScalarGridSpec(
            num_scalar_prefetch=0,
            grid=(N // B,),
            in_specs=in_specs,
            out_specs=pl.BlockSpec((1, Cout, B * L), lambda i: (i, 0, 0)),
        ),
        compiler_params=pltpu.CompilerParams(
            dimension_semantics=("parallel",),
            vmem_limit_bytes=int(vmem_limit)),
        cost_estimate=cost,
    )(*args)

    # Un-interleave the lane-folded batch: cheap layout plumbing in HBM.
    return folded.reshape(N // B, Cout, B, L).transpose(0, 2, 1, 3).reshape(N, Cout, L)


def ref_forward(x, w1, b1, w2, b2, wd, bd, *, dilation, padding):
    """Pure-JAX reference mirroring the PyTorch module (eval mode)."""
    L = x.shape[2]

    def conv1d(h, w, b, d, p):
        out = jax.lax.conv_general_dilated(
            h, w, window_strides=(1,), padding=[(p, p)], rhs_dilation=(d,),
            dimension_numbers=("NCH", "OIH", "NCH"))
        return out + b[None, :, None]

    o1 = conv1d(x, w1, b1, dilation, padding)[:, :, :L]    # chomp1
    o1 = jnp.maximum(o1, 0.0)                              # relu1 (dropout = id)
    o2 = conv1d(o1, w2, b2, dilation, padding)[:, :, :L]   # chomp2
    o2 = jnp.maximum(o2, 0.0)                              # relu2 (dropout = id)
    res = x if wd is None else conv1d(x, wd, bd, 1, 0)     # downsample
    return jnp.maximum(o2 + res, 0.0)                      # final relu


if __name__ == "__main__":
    # TemporalBlock(n_inputs=4, n_outputs=8, kernel_size=3, stride=1,
    #               dilation=2, padding=(3-1)*2=4, dropout=0.2 -> eval)
    N, Cin, Cout, L = 2, 4, 8, 16
    K, dilation = 3, 2
    padding = (K - 1) * dilation

    key = jax.random.PRNGKey(0)
    kx, k1, k2, k3, kb1, kb2, kb3 = jax.random.split(key, 7)

    x = jax.random.normal(kx, (N, Cin, L), jnp.float32)
    # weight_norm(v, g=||v||) yields effective weight == v; init ~ N(0, 0.01)
    w1 = 0.01 * jax.random.normal(k1, (Cout, Cin, K), jnp.float32)
    w2 = 0.01 * jax.random.normal(k2, (Cout, Cout, K), jnp.float32)
    wd = 0.01 * jax.random.normal(k3, (Cout, Cin, 1), jnp.float32)  # Cin != Cout
    b1 = 0.05 * jax.random.normal(kb1, (Cout,), jnp.float32)
    b2 = 0.05 * jax.random.normal(kb2, (Cout,), jnp.float32)
    bd = 0.05 * jax.random.normal(kb3, (Cout,), jnp.float32)

    ref = ref_forward(x, w1, b1, w2, b2, wd, bd, dilation=dilation, padding=padding)

    # 1) f32 MXU operands: bit-tight check against the reference.
    out = temporal_block_forward(x, w1, b1, w2, b2, wd, bd, kernel_size=K,
                                 dilation=dilation, compute_dtype=jnp.float32)
    out = jax.block_until_ready(out)
    assert out.shape == (N, Cout, L)
    assert jnp.allclose(out, ref, atol=1e-5, rtol=1e-5), (
        f"f32 max abs err {jnp.max(jnp.abs(out - ref))}")

    # 2) default bf16 MXU operands (f32 accumulate): looser tolerance.
    out_bf = jax.block_until_ready(
        temporal_block_forward(x, w1, b1, w2, b2, wd, bd,
                               kernel_size=K, dilation=dilation))
    assert jnp.allclose(out_bf, ref, atol=2e-2, rtol=2e-2), (
        f"bf16 max abs err {jnp.max(jnp.abs(out_bf - ref))}")

    # 3) equal-channel block: downsample omitted -> residual path has NO matmul.
    xe = jax.random.normal(kx, (N, Cout, L), jnp.float32)
    w1e = 0.01 * jax.random.normal(k1, (Cout, Cout, K), jnp.float32)
    ref_e = ref_forward(xe, w1e, b1, w2, b2, None, None,
                        dilation=dilation, padding=padding)
    out_e = jax.block_until_ready(
        temporal_block_forward(xe, w1e, b1, w2, b2, None, None, kernel_size=K,
                               dilation=dilation, compute_dtype=jnp.float32))
    assert jnp.allclose(out_e, ref_e, atol=1e-5, rtol=1e-5), (
        f"equal-channel max abs err {jnp.max(jnp.abs(out_e - ref_e))}")

    print("KERNEL_OK")
</pallas_src>

<mosaic_0001>
module attributes {stable_mosaic.version = 11 : i64} {
  func.func @temporal_block_kernel(%arg0: i32, %arg1: memref<1x4x16xf32, #tpu.memory_space<vmem>>, %arg2: memref<16x12xf32, #tpu.memory_space<vmem>>, %arg3: memref<8x1xf32, #tpu.memory_space<vmem>>, %arg4: memref<8x24xf32, #tpu.memory_space<vmem>>, %arg5: memref<8x1xf32, #tpu.memory_space<vmem>>, %arg6: memref<8x1xf32, #tpu.memory_space<vmem>>, %arg7: memref<1x8x16xf32, #tpu.memory_space<vmem>>) attributes {dimension_semantics = [#tpu.dimension_semantics<parallel>], iteration_bounds = array<i64: 2>, scalar_prefetch = 0 : i64, scratch_operands = 0 : i64, tpu.core_type = #tpu.core_type<tc>, window_params = [{transform_indices = @transform_0, window_bounds = array<i64: 1, 4, 16>}, {pipeline_mode = #tpu.pipeline_mode<synchronous>, transform_indices = @transform_1, window_bounds = array<i64: 16, 12>}, {pipeline_mode = #tpu.pipeline_mode<synchronous>, transform_indices = @transform_2, window_bounds = array<i64: 8, 1>}, {pipeline_mode = #tpu.pipeline_mode<synchronous>, transform_indices = @transform_3, window_bounds = array<i64: 8, 24>}, {pipeline_mode = #tpu.pipeline_mode<synchronous>, transform_indices = @transform_4, window_bounds = array<i64: 8, 1>}, {pipeline_mode = #tpu.pipeline_mode<synchronous>, transform_indices = @transform_5, window_bounds = array<i64: 8, 1>}, {transform_indices = @transform_6, window_bounds = array<i64: 1, 8, 16>}]} {
    %c0 = arith.constant 0 : index
    %c0_0 = arith.constant 0 : index
    %c0_1 = arith.constant 0 : index
    %0 = vector.load %arg1[%c0, %c0_0, %c0_1] : memref<1x4x16xf32, #tpu.memory_space<vmem>>, vector<1x4x16xf32>
    %1 = vector.shape_cast %0 : vector<1x4x16xf32> to vector<4x16xf32>
    %c0_2 = arith.constant 0 : index
    %c0_3 = arith.constant 0 : index
    %2 = vector.load %arg2[%c0_2, %c0_3] : memref<16x12xf32, #tpu.memory_space<vmem>>, vector<16x12xf32>
    %cst = arith.constant 0.000000e+00 : f32
    %3 = vector.broadcast %cst : f32 to vector<4x4xf32>
    %4 = tpu.concatenate %3, %1 in 1 : vector<4x4xf32>, vector<4x16xf32> -> vector<4x20xf32>
    %5 = vector.extract_strided_slice %4 {offsets = [0, 0], sizes = [4, 16], strides = [1, 1]} : vector<4x20xf32> to vector<4x16xf32>
    %6 = vector.extract_strided_slice %4 {offsets = [0, 2], sizes = [4, 16], strides = [1, 1]} : vector<4x20xf32> to vector<4x16xf32>
    %7 = vector.extract_strided_slice %4 {offsets = [0, 4], sizes = [4, 16], strides = [1, 1]} : vector<4x20xf32> to vector<4x16xf32>
    %8 = tpu.concatenate %5, %6, %7 in 0 : vector<4x16xf32>, vector<4x16xf32>, vector<4x16xf32> -> vector<12x16xf32>
    %cst_4 = arith.constant dense<0.000000e+00> : vector<16x16xf32>
    %9 = tpu.matmul %2, %8, %cst_4 {dimension_numbers = #tpu.dot_dimension_numbers<[1], [0], [0], [1], [0, 0, 1, 1], [], []>} : vector<16x12xf32>, vector<12x16xf32>, vector<16x16xf32> -> vector<16x16xf32>
    %10 = vector.extract_strided_slice %9 {offsets = [0, 0], sizes = [8, 16], strides = [1, 1]} : vector<16x16xf32> to vector<8x16xf32>
    %11 = vector.extract_strided_slice %9 {offsets = [8, 0], sizes = [8, 16], strides = [1, 1]} : vector<16x16xf32> to vector<8x16xf32>
    %c0_5 = arith.constant 0 : index
    %c0_6 = arith.constant 0 : index
    %12 = vector.load %arg6[%c0_5, %c0_6] : memref<8x1xf32, #tpu.memory_space<vmem>>, vector<8x1xf32>
    %13 = vector.broadcast %12 : vector<8x1xf32> to vector<8x16xf32>
    %14 = arith.addf %11, %13 : vector<8x16xf32>
    %c0_7 = arith.constant 0 : index
    %c0_8 = arith.constant 0 : index
    %15 = vector.load %arg3[%c0_7, %c0_8] : memref<8x1xf32, #tpu.memory_space<vmem>>, vector<8x1xf32>
    %16 = vector.broadcast %15 : vector<8x1xf32> to vector<8x16xf32>
    %17 = arith.addf %10, %16 : vector<8x16xf32>
    %cst_9 = arith.constant 0.000000e+00 : f32
    %18 = vector.broadcast %cst_9 : f32 to vector<8x16xf32>
    %19 = arith.maximumf %17, %18 : vector<8x16xf32>
    %c0_10 = arith.constant 0 : index
    %c0_11 = arith.constant 0 : index
    %20 = vector.load %arg4[%c0_10, %c0_11] : memref<8x24xf32, #tpu.memory_space<vmem>>, vector<8x24xf32>
    %cst_12 = arith.constant 0.000000e+00 : f32
    %21 = vector.broadcast %cst_12 : f32 to vector<8x4xf32>
    %22 = tpu.concatenate %21, %19 in 1 : vector<8x4xf32>, vector<8x16xf32> -> vector<8x20xf32>
    %23 = vector.extract_strided_slice %22 {offsets = [0, 0], sizes = [8, 16], strides = [1, 1]} : vector<8x20xf32> to vector<8x16xf32>
    %24 = vector.extract_strided_slice %22 {offsets = [0, 2], sizes = [8, 16], strides = [1, 1]} : vector<8x20xf32> to vector<8x16xf32>
    %25 = vector.extract_strided_slice %22 {offsets = [0, 4], sizes = [8, 16], strides = [1, 1]} : vector<8x20xf32> to vector<8x16xf32>
    %26 = tpu.concatenate %23, %24, %25 in 0 : vector<8x16xf32>, vector<8x16xf32>, vector<8x16xf32> -> vector<24x16xf32>
    %cst_13 = arith.constant dense<0.000000e+00> : vector<8x16xf32>
    %27 = tpu.matmul %20, %26, %cst_13 {dimension_numbers = #tpu.dot_dimension_numbers<[1], [0], [0], [1], [0, 0, 1, 1], [], []>} : vector<8x24xf32>, vector<24x16xf32>, vector<8x16xf32> -> vector<8x16xf32>
    %c0_14 = arith.constant 0 : index
    %c0_15 = arith.constant 0 : index
    %28 = vector.load %arg5[%c0_14, %c0_15] : memref<8x1xf32, #tpu.memory_space<vmem>>, vector<8x1xf32>
    %29 = vector.broadcast %28 : vector<8x1xf32> to vector<8x16xf32>
    %30 = arith.addf %27, %29 : vector<8x16xf32>
    %cst_16 = arith.constant 0.000000e+00 : f32
    %31 = vector.broadcast %cst_16 : f32 to vector<8x16xf32>
    %32 = arith.maximumf %30, %31 : vector<8x16xf32>
    %33 = arith.addf %32, %14 : vector<8x16xf32>
    %cst_17 = arith.constant 0.000000e+00 : f32
    %34 = vector.broadcast %cst_17 : f32 to vector<8x16xf32>
    %35 = arith.maximumf %33, %34 : vector<8x16xf32>
    %c0_18 = arith.constant 0 : index
    %c0_19 = arith.constant 0 : index
    %c0_20 = arith.constant 0 : index
    %36 = vector.load %arg7[%c0_18, %c0_19, %c0_20] : memref<1x8x16xf32, #tpu.memory_space<vmem>>, vector<1x8x16xf32>
    %37 = vector.shape_cast %36 : vector<1x8x16xf32> to vector<8x16xf32>
    %38 = vector.shape_cast %35 : vector<8x16xf32> to vector<1x8x16xf32>
    tpu.vector_store %arg7[%c0_18, %c0_19, %c0_20], %38 {strides = array<i32>} : memref<1x8x16xf32, #tpu.memory_space<vmem>>, vector<1x8x16xf32>,
    return
  }
  func.func @transform_0(%arg0: i32) -> (i32, i32, i32) {
    %c0_i32 = arith.constant 0 : i32
    %c0_i32_0 = arith.constant 0 : i32
    %c0_i32_1 = arith.constant 0 : i32
    return %arg0, %c0_i32, %c0_i32_0 : i32, i32, i32
  }
  func.func @transform_1(%arg0: i32) -> (i32, i32) {
    %c0_i32 = arith.constant 0 : i32
    %c0_i32_0 = arith.constant 0 : i32
    %c0_i32_1 = arith.constant 0 : i32
    return %c0_i32, %c0_i32_0 : i32, i32
  }
  func.func @transform_2(%arg0: i32) -> (i32, i32) {
    %c0_i32 = arith.constant 0 : i32
    %c0_i32_0 = arith.constant 0 : i32
    %c0_i32_1 = arith.constant 0 : i32
    return %c0_i32, %c0_i32_0 : i32, i32
  }
  func.func @transform_3(%arg0: i32) -> (i32, i32) {
    %c0_i32 = arith.constant 0 : i32
    %c0_i32_0 = arith.constant 0 : i32
    %c0_i32_1 = arith.constant 0 : i32
    return %c0_i32, %c0_i32_0 : i32, i32
  }
  func.func @transform_4(%arg0: i32) -> (i32, i32) {
    %c0_i32 = arith.constant 0 : i32
    %c0_i32_0 = arith.constant 0 : i32
    %c0_i32_1 = arith.constant 0 : i32
    return %c0_i32, %c0_i32_0 : i32, i32
  }
  func.func @transform_5(%arg0: i32) -> (i32, i32) {
    %c0_i32 = arith.constant 0 : i32
    %c0_i32_0 = arith.constant 0 : i32
    %c0_i32_1 = arith.constant 0 : i32
    return %c0_i32, %c0_i32_0 : i32, i32
  }
  func.func @transform_6(%arg0: i32) -> (i32, i32, i32) {
    %c0_i32 = arith.constant 0 : i32
    %c0_i32_0 = arith.constant 0 : i32
    %c0_i32_1 = arith.constant 0 : i32
    return %arg0, %c0_i32, %c0_i32_0 : i32, i32, i32
  }
}

</mosaic_0001>

<llo_original>
// kernel: tpu_custom_call.1
$region0: #{tpu_custom_call.1}
  #allocation0 [shape = 'u32[]', space=smem, size = 0x4, offset = 0x4, fixed_abs, tag = 'smem constant byte address 0x4 - core index']
  #allocation1 [shape = 'u32[144,128]{1,0:T(1,128)}', space=vmem, size = 0x12000, scoped, tag = 'internal scratch']
  %s0 = inlined_call_operand.vmem [shape: f32[2,4,16], index: 0, kind: input, shape index: {}]
  %s1 = inlined_call_operand.vmem [shape: f32[16,12], index: 1, kind: input, shape index: {}]
  %s2 = inlined_call_operand.vmem [shape: f32[8,1], index: 2, kind: input, shape index: {}]
  %s3 = inlined_call_operand.vmem [shape: f32[8,24], index: 3, kind: input, shape index: {}]
  %s4 = inlined_call_operand.vmem [shape: f32[8,1], index: 4, kind: input, shape index: {}]
  %s5 = inlined_call_operand.vmem [shape: f32[8,1], index: 5, kind: input, shape index: {}]
  %s6 = inlined_call_operand.hbm [shape: f32[2,8,16], index: 6, kind: output, shape index: {}]
  %s7 = sld [smem:[#allocation0]]
  $region57: #{tpu_custom_call.1} parent=0
    _
  %s9 = ssub.s32 1, %s7
  %s10 = scalar_select 0, %s9, %s7
  $region1: #{tpu_custom_call.1} parent=0
    #allocation2 [shape = 'u8[8192]{0}', space=vmem, size = 0x2000, scoped, tag = 'output window, operand 0']
    #allocation3 [shape = 's32[2]{0}', space=sflag, size = 0x8, scoped, tag = 'scoped memory for tpu_custom_call.1']
    %11 = vsyncpa [#allocation3], 0
    %s12 = scalar_lea.sflag [#allocation3], 1
    %13 = vsyncpa %s12, 0
    loop: start=0, step=1, limit=4
    $region2: #{tpu_custom_call.1} parent=1 // loop_pre_header
      _
    $region3: #{tpu_custom_call.1} parent=1 // loop_header
      %s15 = sphi 0, %s19
      %p16 = scmp.ge.s32.totalorder %s15, 4
      %s25 = sphi 0, %s27
      %s28 = sphi 0, %s25
      %s29 = sphi 0, %s28
      %s45 = sphi 0, %s29
      %s49 = sphi 0, %s49
      %s51 = sphi 0, %s49
      %s52 = sphi 0, %s51
      %s66 = sphi 0, %s52
      %s70 = sphi 0, %s70
      %s72 = sphi 0, %s70
      %s73 = sphi 0, %s72
      %s87 = sphi 0, %s73
      %s91 = sphi 0, %s91
      %s93 = sphi 0, %s91
      %s94 = sphi 0, %s93
      %s108 = sphi 0, %s94
      %s112 = sphi 0, %s112
      %s114 = sphi 0, %s112
      %s115 = sphi 0, %s114
      %s129 = sphi 0, %s115
      %s133 = sphi 0, %s133
      %s135 = sphi 0, %s133
      %s136 = sphi 0, %s135
      %s150 = sphi 0, %s136
      %s156 = sphi 0, %s158
      %s159 = sphi 0, %s156
      %s160 = sphi 0, %s159
      %s176 = sphi 0, %s160
    $region4: #{tpu_custom_call.1} parent=1 // loop_header_branch
      %18 = sbr.rel (%p16) target = $region8
    $region5: #{tpu_custom_call.1} parent=1 // loop_body
      %s20 = ssub.s32 %s15, 1
      %s21 = ssub.s32 %s15, 2
      %s22 = sadd.s32 %s15, 1
      %s23 = ssub.s32 %s15, %s22
      %p24 = scmp.eq.s32.totalorder %s23, 0
      %s26 = sadd.s32 %s25, 1
      %s27 = scalar_select %p24, %s25, %s26
      %p30 = pneg %p24
      %p31 = scmp.eq.s32.totalorder %s15, 1
      %p32 = por %p30, %p31
      %p33 = scmp.ne.s32.totalorder %s25, %s28
      %p34 = scmp.eq.s32.totalorder %s15, 0
      %p35 = por %p33, %p34
      %p36 = scmp.ne.s32.totalorder %s25, %s28
      %p37 = scmp.eq.s32.totalorder %s20, 1
      %p38 = por %p36, %p37
      %p39 = scmp.ne.s32.totalorder %s28, %s29
      %p40 = scmp.eq.s32.totalorder %s20, 0
      %p41 = por %p39, %p40
      %p42 = scmp.ne.s32.totalorder %s28, %s29
      %p43 = scmp.eq.s32.totalorder %s21, 1
      %p44 = por %p42, %p43
      %p46 = scmp.ne.s32.totalorder %s29, %s45
      %p47 = scmp.eq.s32.totalorder %s21, 0
      %p48 = por %p46, %p47
      %s50 = sadd.s32 %s49, 1
      %p53 = scmp.eq.s32.totalorder %s15, 1
      %p54 = scmp.ne.s32.totalorder %s49, %s51
      %p55 = scmp.eq.s32.totalorder %s15, 0
      %p56 = por %p54, %p55
      %p57 = scmp.ne.s32.totalorder %s49, %s51
      %p58 = scmp.eq.s32.totalorder %s20, 1
      %p59 = por %p57, %p58
      %p60 = scmp.ne.s32.totalorder %s51, %s52
      %p61 = scmp.eq.s32.totalorder %s20, 0
      %p62 = por %p60, %p61
      %p63 = scmp.ne.s32.totalorder %s51, %s52
      %p64 = scmp.eq.s32.totalorder %s21, 1
      %p65 = por %p63, %p64
      %p67 = scmp.ne.s32.totalorder %s52, %s66
      %p68 = scmp.eq.s32.totalorder %s21, 0
      %p69 = por %p67, %p68
      %s71 = sadd.s32 %s70, 1
      %p74 = scmp.eq.s32.totalorder %s15, 1
      %p75 = scmp.ne.s32.totalorder %s70, %s72
      %p76 = scmp.eq.s32.totalorder %s15, 0
      %p77 = por %p75, %p76
      %p78 = scmp.ne.s32.totalorder %s70, %s72
      %p79 = scmp.eq.s32.totalorder %s20, 1
      %p80 = por %p78, %p79
      %p81 = scmp.ne.s32.totalorder %s72, %s73
      %p82 = scmp.eq.s32.totalorder %s20, 0
      %p83 = por %p81, %p82
      %p84 = scmp.ne.s32.totalorder %s72, %s73
      %p85 = scmp.eq.s32.totalorder %s21, 1
      %p86 = por %p84, %p85
      %p88 = scmp.ne.s32.totalorder %s73, %s87
      %p89 = scmp.eq.s32.totalorder %s21, 0
      %p90 = por %p88, %p89
      %s92 = sadd.s32 %s91, 1
      %p95 = scmp.eq.s32.totalorder %s15, 1
      %p96 = scmp.ne.s32.totalorder %s91, %s93
      %p97 = scmp.eq.s32.totalorder %s15, 0
      %p98 = por %p96, %p97
      %p99 = scmp.ne.s32.totalorder %s91, %s93
      %p100 = scmp.eq.s32.totalorder %s20, 1
      %p101 = por %p99, %p100
      %p102 = scmp.ne.s32.totalorder %s93, %s94
      %p103 = scmp.eq.s32.totalorder %s20, 0
      %p104 = por %p102, %p103
      %p105 = scmp.ne.s32.totalorder %s93, %s94
      %p106 = scmp.eq.s32.totalorder %s21, 1
      %p107 = por %p105, %p106
      %p109 = scmp.ne.s32.totalorder %s94, %s108
      %p110 = scmp.eq.s32.totalorder %s21, 0
      %p111 = por %p109, %p110
      %s113 = sadd.s32 %s112, 1
      %p116 = scmp.eq.s32.totalorder %s15, 1
      %p117 = scmp.ne.s32.totalorder %s112, %s114
      %p118 = scmp.eq.s32.totalorder %s15, 0
      %p119 = por %p117, %p118
      %p120 = scmp.ne.s32.totalorder %s112, %s114
      %p121 = scmp.eq.s32.totalorder %s20, 1
      %p122 = por %p120, %p121
      %p123 = scmp.ne.s32.totalorder %s114, %s115
      %p124 = scmp.eq.s32.totalorder %s20, 0
      %p125 = por %p123, %p124
      %p126 = scmp.ne.s32.totalorder %s114, %s115
      %p127 = scmp.eq.s32.totalorder %s21, 1
      %p128 = por %p126, %p127
      %p130 = scmp.ne.s32.totalorder %s115, %s129
      %p131 = scmp.eq.s32.totalorder %s21, 0
      %p132 = por %p130, %p131
      %s134 = sadd.s32 %s133, 1
      %p137 = scmp.eq.s32.totalorder %s15, 1
      %p138 = scmp.ne.s32.totalorder %s133, %s135
      %p139 = scmp.eq.s32.totalorder %s15, 0
      %p140 = por %p138, %p139
      %p141 = scmp.ne.s32.totalorder %s133, %s135
      %p142 = scmp.eq.s32.totalorder %s20, 1
      %p143 = por %p141, %p142
      %p144 = scmp.ne.s32.totalorder %s135, %s136
      %p145 = scmp.eq.s32.totalorder %s20, 0
      %p146 = por %p144, %p145
      %p147 = scmp.ne.s32.totalorder %s135, %s136
      %p148 = scmp.eq.s32.totalorder %s21, 1
      %p149 = por %p147, %p148
      %p151 = scmp.ne.s32.totalorder %s136, %s150
      %p152 = scmp.eq.s32.totalorder %s21, 0
      %p153 = por %p151, %p152
      %s154 = ssub.s32 %s15, %s22
      %p155 = scmp.eq.s32.totalorder %s154, 0
      %s157 = sadd.s32 %s156, 1
      %s158 = scalar_select %p155, %s156, %s157
      %p161 = pneg %p155
      %p162 = scmp.eq.s32.totalorder %s15, 1
      %p163 = por %p161, %p162
      %p164 = scmp.ne.s32.totalorder %s156, %s159
      %p165 = scmp.eq.s32.totalorder %s15, 0
      %p166 = por %p164, %p165
      %p167 = scmp.ne.s32.totalorder %s156, %s159
      %p168 = scmp.eq.s32.totalorder %s20, 1
      %p169 = por %p167, %p168
      %p170 = scmp.ne.s32.totalorder %s159, %s160
      %p171 = scmp.eq.s32.totalorder %s20, 0
      %p172 = por %p170, %p171
      %p173 = scmp.ne.s32.totalorder %s159, %s160
      %p174 = scmp.eq.s32.totalorder %s21, 1
      %p175 = por %p173, %p174
      %p177 = scmp.ne.s32.totalorder %s160, %s176
      %p178 = scmp.eq.s32.totalorder %s21, 0
      %p179 = por %p177, %p178
      %p180 = scmp.le.s32.totalorder 1, %s15
      %p181 = scmp.lt.s32.totalorder %s15, 3
      %p182 = pnand %p180, %p181
      %p183 = pneg %p182
      // Predicated region
      $region9: #{tpu_custom_call.1} parent=5 // pred_check
        _
      $region10: #{tpu_custom_call.1} parent=5 // pred_check_branch
        %185 = sbr.rel (%p182) target = $region12
      $region11: #{tpu_custom_call.1} parent=5 // pred_region
        %s186 = ssub.s32 %s15, 1
        // Predicated region
        $region13: #{tpu_custom_call.1} parent=11 // pred_check
          %p187 = pneg %p62
        $region14: #{tpu_custom_call.1} parent=11 // pred_check_branch
          %189 = sbr.rel (%p187) target = $region16
        $region15: #{tpu_custom_call.1} parent=11 // pred_region
          _
        $region16: #{tpu_custom_call.1} parent=11 // pred_fallthru
          _
        // Predicated region
        $region17: #{tpu_custom_call.1} parent=11 // pred_check
          %p190 = pneg %p83
        $region18: #{tpu_custom_call.1} parent=11 // pred_check_branch
          %192 = sbr.rel (%p190) target = $region20
        $region19: #{tpu_custom_call.1} parent=11 // pred_region
          _
        $region20: #{tpu_custom_call.1} parent=11 // pred_fallthru
          _
        // Predicated region
        $region21: #{tpu_custom_call.1} parent=11 // pred_check
          %p193 = pneg %p104
        $region22: #{tpu_custom_call.1} parent=11 // pred_check_branch
          %195 = sbr.rel (%p193) target = $region24
        $region23: #{tpu_custom_call.1} parent=11 // pred_region
          _
        $region24: #{tpu_custom_call.1} parent=11 // pred_fallthru
          _
        // Predicated region
        $region25: #{tpu_custom_call.1} parent=11 // pred_check
          %p196 = pneg %p125
        $region26: #{tpu_custom_call.1} parent=11 // pred_check_branch
          %198 = sbr.rel (%p196) target = $region28
        $region27: #{tpu_custom_call.1} parent=11 // pred_region
          _
        $region28: #{tpu_custom_call.1} parent=11 // pred_fallthru
          _
        // Predicated region
        $region29: #{tpu_custom_call.1} parent=11 // pred_check
          %p199 = pneg %p146
        $region30: #{tpu_custom_call.1} parent=11 // pred_check_branch
          %201 = sbr.rel (%p199) target = $region32
        $region31: #{tpu_custom_call.1} parent=11 // pred_region
          _
        $region32: #{tpu_custom_call.1} parent=11 // pred_fallthru
          _
      $region12: #{tpu_custom_call.1} parent=5 // pred_fallthru
        _
      %p202 = scmp.lt.s32.totalorder %s15, 2
      // Predicated region
      $region33: #{tpu_custom_call.1} parent=5 // pred_check
        %p203 = pneg %p202
      $region34: #{tpu_custom_call.1} parent=5 // pred_check_branch
        %205 = sbr.rel (%p203) target = $region36
      $region35: #{tpu_custom_call.1} parent=5 // pred_region
        // Predicated region
        $region37: #{tpu_custom_call.1} parent=35 // pred_check
          %p206 = pneg %p35
        $region38: #{tpu_custom_call.1} parent=35 // pred_check_branch
          %208 = sbr.rel (%p206) target = $region40
        $region39: #{tpu_custom_call.1} parent=35 // pred_region
          %p209 = scmp.lt.s32.totalorder %s15, 1
          %s210 = scalar_select %p209, %s15, 1
          %s211 = smul.addr %s210, 4
          %s212 = scalar_lea.vmem %s0, %s211
        $region40: #{tpu_custom_call.1} parent=35 // pred_fallthru
          _
      $region36: #{tpu_custom_call.1} parent=5 // pred_fallthru
        _
      %p213 = scmp.le.s32.totalorder 1, %s15
      %p214 = scmp.lt.s32.totalorder %s15, 3
      %p215 = pnand %p213, %p214
      %p216 = pneg %p215
      // Predicated region
      $region41: #{tpu_custom_call.1} parent=5 // pred_check
        _
      $region42: #{tpu_custom_call.1} parent=5 // pred_check_branch
        %218 = sbr.rel (%p215) target = $region44
      $region43: #{tpu_custom_call.1} parent=5 // pred_region
        %s219 = ssub.s32 %s15, 1
        %p220 = scmp.lt.s32.totalorder %s20, 1
        %s221 = scalar_select %p220, %s20, 1
        %s222 = smul.addr %s221, 4
        %s223 = scalar_lea.vmem %s0, %s222
        %p224 = pneg %p41
        %p225 = pneg %p38
        %p226 = pneg %p62
        %p227 = pneg %p59
        %p228 = pneg %p83
        %p229 = pneg %p80
        %p230 = pneg %p104
        %p231 = pneg %p101
        %p232 = pneg %p125
        %p233 = pneg %p122
        %p234 = pneg %p146
        %p235 = pneg %p143
        %p236 = pneg %p172
        %p237 = pneg %p169
        %s238 = sand.u32 %s159, 1
        %s239 = scalar_lea.sflag [#allocation3], %s238
        %s240 = sand.u32 %s159, 1
        %s241 = smul.addr %s240, 8
        %s242 = scalar_lea.vmem [#allocation2], %s241
        %p243 = scmp.lt.s32.totalorder %s20, 1
        %s244 = scalar_select %p243, %s20, 1
        %s245 = smul.addr %s244, 4
        %s246 = scalar_lea.vmem %s0, %s245
        %v247 = vld [vmem:[%s246] sm:$0xf]
        %v248 = vld [vmem:[%s1] sm:$0xff]
        %v249 = vld [vmem:[%s1 + $0x8] sm:$0xff]
        %251 = vrot.lane.b32.xlu0 %v247, 4
        %v252 = vpop.permute.xlu0 %251
        %vm254 = vcmask 31744
        %v255 = vsel %vm254, 0.0, %v252
        %v257 = vrot.slane %v255, 4
        %258 = vrot.lane.b32.xlu0 %v257, 126
        %v259 = vpop.permute.xlu0 %258
        %261 = vrot.lane.b32.xlu0 %v255, 124
        %v262 = vpop.permute.xlu0 %261
        %vm263 = vcmask 1043456
        %v264 = vsel %vm263, %v255, %v259
        %vm265 = vcmask 97280
        %v267 = vsel %vm265, %v248, 0
        %v270 = vsel %vm265, %v249, 0
        %v272 = vsel %vm263, %v262, 0
        %274 = vmatprep.subr.mxu0 0.0
        %275 = vmatpush1.msra.mxu0 %v264
        %276 = vmatprep.subr.mxu0 0.0
        %277 = vmatpush1.msra.mxu0 %v272
        %278 = vmatprep.subr.mxu0 0.0
        %279 = vmatpush1.msra.mxu0 0.0
        %280 = vmatprep.subr.mxu0 0.0
        %281 = vmatpush1.msra.mxu0 0.0
        %282 = vmatprep.subr.mxu0 0.0
        %283 = vmatpush1.msra.mxu0 0.0
        %284 = vmatprep.subr.mxu0 0.0
        %285 = vmatpush1.msra.mxu0 0.0
        %286 = vmatprep.subr.mxu0 0.0
        %287 = vmatpush1.msra.mxu0 0.0
        %288 = vmatprep.subr.mxu0 0.0
        %289 = vmatpush1.msra.mxu0 0.0
        %290 = vmatprep.subr.mxu0 0.0
        %291 = vmatpush1.msra.mxu0 0.0
        %292 = vmatprep.subr.mxu0 0.0
        %293 = vmatpush1.msra.mxu0 0.0
        %294 = vmatprep.subr.mxu0 0.0
        %295 = vmatpush1.msra.mxu0 0.0
        %296 = vmatprep.subr.mxu0 0.0
        %297 = vmatpush1.msra.mxu0 0.0
        %298 = vmatprep.subr.mxu0 0.0
        %299 = vmatpush1.msra.mxu0 0.0
        %300 = vmatprep.subr.mxu0 0.0
        %301 = vmatpush1.msra.mxu0 0.0
        %302 = vmatprep.subr.mxu0 0.0
        %303 = vmatpush1.msra.mxu0 0.0
        %304 = vmatprep.subr.mxu0 0.0
        %305 = vmatpush1.msra.mxu0 0.0
        %306 = vmatprep.subr.mxu0 0.0
        %307 = vmatpush1.msra.mxu0 0.0
        %308 = vmatprep.subr.mxu0 0.0
        %309 = vmatpush1.msra.mxu0 0.0
        %310 = vmatprep.subr.mxu0 0.0
        %311 = vmatpush1.msra.mxu0 0.0
        %312 = vmatprep.subr.mxu0 0.0
        %313 = vmatpush1.msra.mxu0 0.0
        %314 = vmatprep.subr.mxu0 0.0
        %315 = vmatpush1.msra.mxu0 0.0
        %316 = vmatprep.subr.mxu0 0.0
        %317 = vmatpush1.msra.mxu0 0.0
        %318 = vmatprep.subr.mxu0 0.0
        %319 = vmatpush1.msra.mxu0 0.0
        %320 = vmatprep.subr.mxu0 0.0
        %321 = vmatpush1.msra.mxu0 0.0
        %322 = vmatprep.subr.mxu0 0.0
        %323 = vmatpush1.msra.mxu0 0.0
        %324 = vmatprep.subr.mxu0 0.0
        %325 = vmatpush1.msra.mxu0 0.0
        %326 = vmatprep.subr.mxu0 0.0
        %327 = vmatpush1.msra.mxu0 0.0
        %328 = vmatprep.subr.mxu0 0.0
        %329 = vmatpush1.msra.mxu0 0.0
        %330 = vmatprep.subr.mxu0 0.0
        %331 = vmatpush1.msra.mxu0 0.0
        %332 = vmatprep.subr.mxu0 0.0
        %333 = vmatpush1.msra.mxu0 0.0
        %334 = vmatprep.subr.mxu0 0.0
        %335 = vmatpush1.msra.mxu0 0.0
        %336 = vmatprep.subr.mxu0 0.0
        %337 = vmatpush1.msra.mxu0 0.0
        %338 = vmatprep.mubr.f32.mxu0 0.0
        %339 = vmatmul.mubr.f32.gmra.mrb[0].mxu0 %v267
        %v340 = vpop.f32.mrb[0].mxu0
        %v341 = vadd.f32 0.0, %v340
        %v342 = vpop.f32.mrb[0].mxu0
        %343 = vmatprep.mubr.f32.mxu0 0.0
        %344 = vmatmul.mubr.f32.gmra.mrb[0].mxu0 %v270
        %v345 = vpop.f32.mrb[0].mxu0
        %v346 = vadd.f32 0.0, %v345
        %v347 = vpop.f32.mrb[0].mxu0
        %348 = vdwg.mxu0
        %v349 = vld [vmem:[%s5] sm:$0xff]
        %351 = vset.pattern.permute.xlu0 0
        %352 = vperm.xlu0 %351, %v349
        %v353 = vpop.permute.xlu0 %352
        %v355 = vadd.f32 %v346, %v353
        %v356 = vld [vmem:[%s2] sm:$0xff]
        %358 = vset.pattern.permute.xlu0 0
        %359 = vperm.xlu0 %358, %v356
        %v360 = vpop.permute.xlu0 %359
        %v362 = vadd.f32 %v341, %v360
        %v363 = vmax.f32 %v362, 0.0
        %v364 = vld [vmem:[%s3] sm:$0xff]
        %366 = vrot.lane.b32.xlu0 %v363, 4
        %v367 = vpop.permute.xlu0 %366
        %v369 = vsel %vm254, 0.0, %v367
        %371 = vrot.lane.b32.xlu0 %v369, 126
        %v372 = vpop.permute.xlu0 %371
        %374 = vrot.lane.b32.xlu0 %v369, 124
        %v375 = vpop.permute.xlu0 %374
        %v377 = vld [vmem:[%s4] sm:$0xff]
        %379 = vset.pattern.permute.xlu0 0
        %380 = vperm.xlu0 %379, %v377
        %v381 = vpop.permute.xlu0 %380
        %vm383 = vcmask 195584
        %v385 = vsel %vm383, %v364, 0
        %387 = vmatprep.subr.mxu0 0.0
        %388 = vmatpush1.msra.mxu0 %v369
        %389 = vmatprep.subr.mxu0 0.0
        %390 = vmatpush1.msra.mxu0 %v372
        %391 = vmatprep.subr.mxu0 0.0
        %392 = vmatpush1.msra.mxu0 %v375
        %393 = vmatprep.subr.mxu0 0.0
        %394 = vmatpush1.msra.mxu0 0.0
        %395 = vmatprep.subr.mxu0 0.0
        %396 = vmatpush1.msra.mxu0 0.0
        %397 = vmatprep.subr.mxu0 0.0
        %398 = vmatpush1.msra.mxu0 0.0
        %399 = vmatprep.subr.mxu0 0.0
        %400 = vmatpush1.msra.mxu0 0.0
        %401 = vmatprep.subr.mxu0 0.0
        %402 = vmatpush1.msra.mxu0 0.0
        %403 = vmatprep.subr.mxu0 0.0
        %404 = vmatpush1.msra.mxu0 0.0
        %405 = vmatprep.subr.mxu0 0.0
        %406 = vmatpush1.msra.mxu0 0.0
        %407 = vmatprep.subr.mxu0 0.0
        %408 = vmatpush1.msra.mxu0 0.0
        %409 = vmatprep.subr.mxu0 0.0
        %410 = vmatpush1.msra.mxu0 0.0
        %411 = vmatprep.subr.mxu0 0.0
        %412 = vmatpush1.msra.mxu0 0.0
        %413 = vmatprep.subr.mxu0 0.0
        %414 = vmatpush1.msra.mxu0 0.0
        %415 = vmatprep.subr.mxu0 0.0
        %416 = vmatpush1.msra.mxu0 0.0
        %417 = vmatprep.subr.mxu0 0.0
        %418 = vmatpush1.msra.mxu0 0.0
        %419 = vmatprep.subr.mxu0 0.0
        %420 = vmatpush1.msra.mxu0 0.0
        %421 = vmatprep.subr.mxu0 0.0
        %422 = vmatpush1.msra.mxu0 0.0
        %423 = vmatprep.subr.mxu0 0.0
        %424 = vmatpush1.msra.mxu0 0.0
        %425 = vmatprep.subr.mxu0 0.0
        %426 = vmatpush1.msra.mxu0 0.0
        %427 = vmatprep.subr.mxu0 0.0
        %428 = vmatpush1.msra.mxu0 0.0
        %429 = vmatprep.subr.mxu0 0.0
        %430 = vmatpush1.msra.mxu0 0.0
        %431 = vmatprep.subr.mxu0 0.0
        %432 = vmatpush1.msra.mxu0 0.0
        %433 = vmatprep.subr.mxu0 0.0
        %434 = vmatpush1.msra.mxu0 0.0
        %435 = vmatprep.subr.mxu0 0.0
        %436 = vmatpush1.msra.mxu0 0.0
        %437 = vmatprep.subr.mxu0 0.0
        %438 = vmatpush1.msra.mxu0 0.0
        %439 = vmatprep.subr.mxu0 0.0
        %440 = vmatpush1.msra.mxu0 0.0
        %441 = vmatprep.subr.mxu0 0.0
        %442 = vmatpush1.msra.mxu0 0.0
        %443 = vmatprep.subr.mxu0 0.0
        %444 = vmatpush1.msra.mxu0 0.0
        %445 = vmatprep.subr.mxu0 0.0
        %446 = vmatpush1.msra.mxu0 0.0
        %447 = vmatprep.subr.mxu0 0.0
        %448 = vmatpush1.msra.mxu0 0.0
        %449 = vmatprep.subr.mxu0 0.0
        %450 = vmatpush1.msra.mxu0 0.0
        %451 = vmatprep.mubr.f32.mxu0 0.0
        %452 = vmatmul.mubr.f32.gmra.mrb[0].mxu0 %v385
        %v453 = vpop.f32.mrb[0].mxu0
        %v454 = vadd.f32 %v381, %v453
        %v455 = vpop.f32.mrb[0].mxu0
        %456 = vdwg.mxu0
        %v457 = vmax.f32 %v454, 0.0
        %v458 = vadd.f32 %v457, %v355
        %v459 = vmax.f32 %v458, 0.0
        %vm460 = vcmask 130048
        %461 = vst.msk [vmem:[%s242] sm:$0xff] %vm460, %v459
        %s462 = sand.u32 %s159, 1
        %s463 = scalar_lea.sflag [#allocation3], %s462
        %s464 = sand.u32 %s159, 1
        %s465 = smul.addr %s464, 8
        %s466 = scalar_lea.vmem [#allocation2], %s465
        // Predicated region
        $region45: #{tpu_custom_call.1} parent=43 // pred_check
          %p467 = pneg %p169
        $region46: #{tpu_custom_call.1} parent=43 // pred_check_branch
          %469 = sbr.rel (%p467) target = $region48
        $region47: #{tpu_custom_call.1} parent=43 // pred_region
          %s471 = ssub.s32 128, 128
          %472 = vsyncadd %s463, %s471
          %s473 = smul.addr %s20, 128
          %s474 = scalar_lea.hbm %s6, %s473
          %s476 = sshll.u32 %s466, 4
          %s477 = int_to_ptr.vmem [resolvable:$true] %s476
          %479 = dma.vmem_to_hbm [thread:$0]  %s477, 128, %s474, %s463
        $region48: #{tpu_custom_call.1} parent=43 // pred_fallthru
          _
      $region44: #{tpu_custom_call.1} parent=5 // pred_fallthru
        _
      %p480 = scmp.le.s32.totalorder 2, %s15
      // Predicated region
      $region49: #{tpu_custom_call.1} parent=5 // pred_check
        %p481 = pneg %p480
      $region50: #{tpu_custom_call.1} parent=5 // pred_check_branch
        %483 = sbr.rel (%p481) target = $region52
      $region51: #{tpu_custom_call.1} parent=5 // pred_region
        %s484 = ssub.s32 %s15, 2
        // Predicated region
        $region53: #{tpu_custom_call.1} parent=51 // pred_check
          %p485 = pneg %p175
        $region54: #{tpu_custom_call.1} parent=51 // pred_check_branch
          %487 = sbr.rel (%p485) target = $region56
        $region55: #{tpu_custom_call.1} parent=51 // pred_region
          %s488 = sand.u32 %s160, 1
          %s489 = scalar_lea.sflag [#allocation3], %s488
          %s490 = sand.u32 %s160, 1
          %s491 = smul.addr %s490, 8
          %s492 = scalar_lea.vmem [#allocation2], %s491
          %493 = dma.done %s489, 128
        $region56: #{tpu_custom_call.1} parent=51 // pred_fallthru
          _
      $region52: #{tpu_custom_call.1} parent=5 // pred_fallthru
        _
    $region6: #{tpu_custom_call.1} parent=1 // loop_footer
      %s19 = sadd.s32 1, %s15
    $region7: #{tpu_custom_call.1} parent=1 // loop_footer_branch
      %14 = sbr.rel target = $region3
    $region8: #{tpu_custom_call.1} parent=1 // loop_exit
      _
    %494 = vsyncpa [#allocation3], 1
    %s495 = scalar_lea.sflag [#allocation3], 1
    %496 = vsyncpa %s495, 1

</llo_original>
